<compile_context>
chip_gen: v5e
topology: v5e:2x2
jax: 0.10.0
libtpu: 0.0.40
codegen_flags: <defaults>
</compile_context>

<pallas_src>
import functools
import math

import jax
import jax.numpy as jnp
from jax import lax
from jax.experimental import pallas as pl
from jax.experimental.pallas import tpu as pltpu

# VAT hyper-parameters from the PyTorch module (n_power = 1 handled inline).
XI = 1e-6                     # cancels analytically; kept for documentation
EPSILON = 3.5
NORM_EPS = 1e-12              # eps used by F.normalize(p=2)
_NORM_EPS_SQ = NORM_EPS * NORM_EPS

# Works with both current (CompilerParams) and older (TPUCompilerParams) names.
_CompilerParams = getattr(pltpu, "CompilerParams", None) or getattr(
    pltpu, "TPUCompilerParams"
)


# --------------------------------------------------------------------------
# helpers
# --------------------------------------------------------------------------
def _log_softmax_rows(z):
    """log_softmax over dim=1 for a [TB, K] tile (matches F.log_softmax)."""
    m = jnp.max(z, axis=1, keepdims=True)
    s = z - m
    return s - jnp.log(jnp.sum(jnp.exp(s), axis=1, keepdims=True))


def _mix_u32(x):
    """Cheap uint32 mixer built only from shifts / xors / adds (no integer
    multiplies), so it lowers on every TPU generation's VPU and in interpret
    mode.  Adequate avalanche for a seed direction that is only used through
    its (sign-symmetric) normalized form."""
    x = x ^ (x >> 17)
    x = x + jnp.uint32(0x9E3779B9)
    x = x ^ (x << 13)
    x = x ^ (x >> 7)
    x = x + jnp.uint32(0x85EBCA6B)
    x = x ^ (x << 9)
    x = x ^ (x >> 16)
    x = x + jnp.uint32(0xC2B2AE35)
    x = x ^ (x << 5)
    x = x ^ (x >> 11)
    return x


# --------------------------------------------------------------------------
# kernel
# --------------------------------------------------------------------------
def vat_kernel(seed_ref, logit_ref, w_ref, g_ref, loss_ref, *, dc, n_chunks):
    # seed_ref : SMEM (1,) int32   scalar-prefetched PRNG seed
    # logit_ref: VMEM [TB, K] f32  clean logits tile (logit == flatten(x) @ W + b)
    # w_ref    : VMEM [Dp, K] bf16 linear-model weight (zero-padded rows, resident)
    # g_ref    : VMEM [K, K] f32   Gram matrix G = W^T W (resident)
    # loss_ref : VMEM [TB, 1] f32  per-sample VAT loss
    tb, k = logit_ref.shape
    tile = pl.program_id(0)

    # ---- per-row PRNG keys: hash(seed) folded with the global row index ----
    seed_mix = _mix_u32(seed_ref[0].astype(jnp.uint32))
    row_ids = lax.broadcasted_iota(jnp.int32, (tb, 1), 0) + tile * tb
    row_key = _mix_u32(seed_mix + row_ids.astype(jnp.uint32))          # [TB, 1]

    col_iota = lax.broadcasted_iota(jnp.int32, (tb, dc), 1)            # [TB, DC]

    # ---- dW = d0 @ W accumulated over D chunks (bf16 MXU operands, f32 acc).
    #      The full [TB, D] d0 is never materialized; its scale / L2 norm and
    #      the xi factor cancel analytically below, so no ||d0||^2 pass.
    def chunk(c, dw_acc):
        off = c * dc
        ctr = (col_iota + off).astype(jnp.uint32) + row_key
        bits = _mix_u32(ctr).astype(jnp.int32)                         # [TB, DC]
        # Irwin-Hall(4) over the four bytes: symmetric, ~bell-shaped.
        s = ((bits & 0xFF) + ((bits >> 8) & 0xFF)
             + ((bits >> 16) & 0xFF) + ((bits >> 24) & 0xFF))
        d0 = (s.astype(jnp.float32) - jnp.float32(510.0)).astype(jnp.bfloat16)
        w_chunk = w_ref[pl.ds(off, dc), :]                             # [DC, K]
        return dw_acc + jnp.dot(d0, w_chunk, preferred_element_type=jnp.float32)

    dw0 = jnp.zeros((tb, k), jnp.float32)
    if n_chunks == 1:
        dw = chunk(0, dw0)
    else:
        dw = lax.fori_loop(0, n_chunks, chunk, dw0)                    # [TB, K]

    # ---- analytic first-order VAT direction (Gram trick, no [TB, D] grad) ---
    logit = logit_ref[...]
    logq = _log_softmax_rows(logit)
    q = jnp.exp(logq)                                                  # detached q
    # d(KL(q||softmax(logit+delta)))/d(logit_m) at xi->0:
    #   g = q * (delta - <q, delta>)   with delta ∝ d0 @ W.
    # The overall scale of delta cancels after the eps-normalization below, so
    # dropping xi / ||d0|| here is exact, not an approximation.
    qd = jnp.sum(q * dw, axis=1, keepdims=True)
    g = q * (dw - qd)                                                  # [TB, K]
    # grad_d = g @ W^T is never formed:  ||grad_d||^2 = g.G.g^T  and
    # r_vadv @ W = eps * (g @ G) / ||grad_d||   with G = W^T W.
    gG = jnp.dot(g, g_ref[...], preferred_element_type=jnp.float32)    # [TB, K]
    inv_gn = lax.rsqrt(
        jnp.maximum(jnp.sum(g * gG, axis=1, keepdims=True),
                    jnp.float32(_NORM_EPS_SQ)))                        # [TB, 1]
    logit_m2 = logit + (jnp.float32(EPSILON) * inv_gn) * gG

    # ---- loss = KL(softmax(logit) || softmax(logit_m2)) per sample ----------
    logp2 = _log_softmax_rows(logit_m2)
    loss_ref[...] = jnp.sum(q * (logq - logp2), axis=1, keepdims=True)


# --------------------------------------------------------------------------
# wrapper
# --------------------------------------------------------------------------
def _round_up(x, m):
    return ((x + m - 1) // m) * m


def _vmem_capacity_bytes():
    """Generation-aware VMEM capacity; conservative 64 MiB (v7x) fallback."""
    try:
        fn = getattr(pltpu, "get_tpu_info", None)
        if fn is not None:
            cap = getattr(fn(), "vmem_capacity_bytes", None)
            if cap:
                return int(cap)
    except Exception:
        pass
    return 64 << 20


def _pick_chunk(dp):
    """Largest 128-multiple chunk of the (padded) feature axis that divides Dp."""
    for cand in (2048, 1536, 1024, 768, 512, 384, 256, 128):
        if dp % cand == 0:
            return cand
    return dp


def _pick_batch_tile(batch, budget_rows):
    """Power-of-two batch tile within the VMEM row budget; keeps >= 2 grid
    steps when the batch allows so the 'parallel' axis spans both v7x TCs."""
    cap_rows = min(int(budget_rows), 1024)
    if batch >= 16:
        cap_rows = min(cap_rows, _round_up((batch + 1) // 2, 8))
    else:
        cap_rows = min(cap_rows, 8)
    tb = 8
    while tb * 2 <= cap_rows:
        tb *= 2
    return tb


def vat_loss_pallas(x_nchw, logit, W, b, seed=0):
    """Per-sample VAT loss, shape [B] (matches the PyTorch module's forward)."""
    del b  # the identity logit_m = logit + r @ W already absorbs the bias
    B = x_nchw.shape[0]
    D = math.prod(x_nchw.shape[1:])
    K = logit.shape[-1]
    assert W.shape == (D, K)

    # ---- host-side prep: Gram matrix, bf16 weights, 128-aligned feature axis.
    Wf = W.astype(jnp.float32)
    G = Wf.T @ Wf                               # [K, K] Gram matrix (tiny, f32)
    W_bf = Wf.astype(jnp.bfloat16)
    Dp = _round_up(D, 128)
    if Dp != D:
        W_bf = jnp.pad(W_bf, ((0, Dp - D), (0, 0)))   # zero rows: harmless

    DC = _pick_chunk(Dp)
    n_chunks = Dp // DC

    # ---- VMEM budget (generation aware) and batch tiling / padding ----------
    cap = _vmem_capacity_bytes()
    resident = 2 * (Dp * K * 2 + K * K * 4)           # double-buffered W + G
    avail = max(cap // 2 - resident, 2 << 20)
    bytes_per_row = 6 * DC * 4 + 16 * K * 4 + 64      # chunk temporaries + epilogue
    budget_rows = max(8, avail // bytes_per_row)
    TB = _pick_batch_tile(B, budget_rows)

    Bp = _round_up(B, TB)
    logit_f = logit.astype(jnp.float32)
    if Bp != B:
        logit_f = jnp.pad(logit_f, ((0, Bp - B), (0, 0)))  # padded rows discarded
    grid = (Bp // TB,)

    est = resident + 2 * (TB * K * 4 + TB * 4) + 8 * TB * DC * 4 + (2 << 20)
    vmem_limit = int(min(max(2 * est, 32 << 20), max(cap * 3 // 4, est)))
    vmem_limit = max(vmem_limit, est)

    kernel = functools.partial(vat_kernel, dc=DC, n_chunks=n_chunks)
    seed_arr = jnp.asarray([seed], dtype=jnp.int32)

    loss = pl.pallas_call(
        kernel,
        out_shape=jax.ShapeDtypeStruct((Bp, 1), jnp.float32),
        grid_spec=pltpu.PrefetchScalarGridSpec(
            num_scalar_prefetch=1,
            grid=grid,
            in_specs=[
                pl.BlockSpec((TB, K), lambda i, s: (i, 0)),   # logit tile
                pl.BlockSpec((Dp, K), lambda i, s: (0, 0)),   # W, VMEM-resident
                pl.BlockSpec((K, K), lambda i, s: (0, 0)),    # G, VMEM-resident
            ],
            out_specs=pl.BlockSpec((TB, 1), lambda i, s: (i, 0)),
        ),
        compiler_params=_CompilerParams(
            dimension_semantics=("parallel",),
            vmem_limit_bytes=vmem_limit,
        ),
    )(seed_arr, logit_f, W_bf, G)
    return loss[:B, 0]


# --------------------------------------------------------------------------
# demo / self-check
# --------------------------------------------------------------------------
if __name__ == "__main__":
    # Small shapes consistent with the module's forward: X is an NCHW image
    # batch, logit is [B, num_classes].
    B, C, H, Wd = 2, 4, 16, 16
    D = C * H * Wd
    K = 8  # number of classes

    key = jax.random.PRNGKey(0)
    k_x, k_w = jax.random.split(key, 2)

    X = jax.random.normal(k_x, (B, C, H, Wd), dtype=jnp.float32)

    # Deterministic synthetic linear "model": logit = flatten(x) @ W + b.
    W_model = 0.02 * jax.random.normal(k_w, (D, K), dtype=jnp.float32)
    b_model = jnp.zeros((K,), dtype=jnp.float32)

    # `logit` argument: clean-forward logits of X through the model (in JAX).
    logit = X.reshape(B, D) @ W_model + b_model

    loss = vat_loss_pallas(X, logit, W_model, b_model, seed=0)
    loss = jax.block_until_ready(loss)

    assert loss.shape == (B,)
    assert bool(jnp.all(jnp.isfinite(loss)))
    assert bool(jnp.all(loss >= -1e-5))   # KL divergence is non-negative
    print("KERNEL_OK")
</pallas_src>

<mosaic_0001>
module attributes {stable_mosaic.version = 11 : i64} {
  func.func @vat_kernel(%arg0: i32, %arg1: memref<1xi32, #tpu.memory_space<smem>>, %arg2: memref<8x8xf32, #tpu.memory_space<vmem>>, %arg3: memref<1024x8xbf16, #tpu.memory_space<vmem>>, %arg4: memref<8x8xf32, #tpu.memory_space<vmem>>, %arg5: memref<8x1xf32, #tpu.memory_space<vmem>>) attributes {dimension_semantics = [#tpu.dimension_semantics<parallel>], iteration_bounds = array<i64: 1>, scalar_prefetch = 1 : i64, scratch_operands = 0 : i64, tpu.core_type = #tpu.core_type<tc>, window_params = [{transform_indices = @transform_0, window_bounds = array<i64: 8, 8>}, {pipeline_mode = #tpu.pipeline_mode<synchronous>, transform_indices = @transform_1, window_bounds = array<i64: 1024, 8>}, {pipeline_mode = #tpu.pipeline_mode<synchronous>, transform_indices = @transform_2, window_bounds = array<i64: 8, 8>}, {transform_indices = @transform_3, window_bounds = array<i64: 8, 1>}]} {
    %c0 = arith.constant 0 : index
    %0 = memref.load %arg1[%c0] : memref<1xi32, #tpu.memory_space<smem>>
    %c17_i32 = arith.constant 17 : i32
    %1 = arith.shrui %0, %c17_i32 : i32
    %2 = arith.xori %0, %1 : i32
    %c-1640531527_i32 = arith.constant -1640531527 : i32
    %3 = arith.addi %2, %c-1640531527_i32 : i32
    %c13_i32 = arith.constant 13 : i32
    %4 = arith.shli %3, %c13_i32 : i32
    %5 = arith.xori %3, %4 : i32
    %c7_i32 = arith.constant 7 : i32
    %6 = arith.shrui %5, %c7_i32 : i32
    %7 = arith.xori %5, %6 : i32
    %c-2048144789_i32 = arith.constant -2048144789 : i32
    %8 = arith.addi %7, %c-2048144789_i32 : i32
    %c9_i32 = arith.constant 9 : i32
    %9 = arith.shli %8, %c9_i32 : i32
    %10 = arith.xori %8, %9 : i32
    %c16_i32 = arith.constant 16 : i32
    %11 = arith.shrui %10, %c16_i32 : i32
    %12 = arith.xori %10, %11 : i32
    %c-1028477387_i32 = arith.constant -1028477387 : i32
    %13 = arith.addi %12, %c-1028477387_i32 : i32
    %c5_i32 = arith.constant 5 : i32
    %14 = arith.shli %13, %c5_i32 : i32
    %15 = arith.xori %13, %14 : i32
    %c11_i32 = arith.constant 11 : i32
    %16 = arith.shrui %15, %c11_i32 : i32
    %17 = arith.xori %15, %16 : i32
    %18 = tpu.iota {dimensions = array<i32: 0>} : vector<8x1xi32>
    %c8_i32 = arith.constant 8 : i32
    %19 = arith.muli %arg0, %c8_i32 : i32
    %20 = vector.broadcast %19 : i32 to vector<8x1xi32>
    %21 = arith.addi %18, %20 : vector<8x1xi32>
    %22 = vector.broadcast %17 : i32 to vector<8x1xi32>
    %23 = arith.addi %22, %21 : vector<8x1xi32>
    %c17_i32_0 = arith.constant 17 : i32
    %24 = vector.broadcast %c17_i32_0 : i32 to vector<8x1xi32>
    %25 = arith.shrui %23, %24 : vector<8x1xi32>
    %26 = arith.xori %23, %25 : vector<8x1xi32>
    %c-1640531527_i32_1 = arith.constant -1640531527 : i32
    %27 = vector.broadcast %c-1640531527_i32_1 : i32 to vector<8x1xi32>
    %28 = arith.addi %26, %27 : vector<8x1xi32>
    %c13_i32_2 = arith.constant 13 : i32
    %29 = vector.broadcast %c13_i32_2 : i32 to vector<8x1xi32>
    %30 = arith.shli %28, %29 : vector<8x1xi32>
    %31 = arith.xori %28, %30 : vector<8x1xi32>
    %c7_i32_3 = arith.constant 7 : i32
    %32 = vector.broadcast %c7_i32_3 : i32 to vector<8x1xi32>
    %33 = arith.shrui %31, %32 : vector<8x1xi32>
    %34 = arith.xori %31, %33 : vector<8x1xi32>
    %c-2048144789_i32_4 = arith.constant -2048144789 : i32
    %35 = vector.broadcast %c-2048144789_i32_4 : i32 to vector<8x1xi32>
    %36 = arith.addi %34, %35 : vector<8x1xi32>
    %c9_i32_5 = arith.constant 9 : i32
    %37 = vector.broadcast %c9_i32_5 : i32 to vector<8x1xi32>
    %38 = arith.shli %36, %37 : vector<8x1xi32>
    %39 = arith.xori %36, %38 : vector<8x1xi32>
    %c16_i32_6 = arith.constant 16 : i32
    %40 = vector.broadcast %c16_i32_6 : i32 to vector<8x1xi32>
    %41 = arith.shrui %39, %40 : vector<8x1xi32>
    %42 = arith.xori %39, %41 : vector<8x1xi32>
    %c-1028477387_i32_7 = arith.constant -1028477387 : i32
    %43 = vector.broadcast %c-1028477387_i32_7 : i32 to vector<8x1xi32>
    %44 = arith.addi %42, %43 : vector<8x1xi32>
    %c5_i32_8 = arith.constant 5 : i32
    %45 = vector.broadcast %c5_i32_8 : i32 to vector<8x1xi32>
    %46 = arith.shli %44, %45 : vector<8x1xi32>
    %47 = arith.xori %44, %46 : vector<8x1xi32>
    %c11_i32_9 = arith.constant 11 : i32
    %48 = vector.broadcast %c11_i32_9 : i32 to vector<8x1xi32>
    %49 = arith.shrui %47, %48 : vector<8x1xi32>
    %50 = arith.xori %47, %49 : vector<8x1xi32>
    %51 = tpu.iota {dimensions = array<i32: 1>} : vector<8x1024xi32>
    %cst = arith.constant 0.000000e+00 : f32
    %52 = vector.broadcast %cst : f32 to vector<8x8xf32>
    %c0_i32 = arith.constant 0 : i32
    %53 = vector.broadcast %c0_i32 : i32 to vector<8x1024xi32>
    %54 = arith.addi %51, %53 : vector<8x1024xi32>
    %55 = vector.broadcast %50 : vector<8x1xi32> to vector<8x1024xi32>
    %56 = arith.addi %54, %55 : vector<8x1024xi32>
    %c17_i32_10 = arith.constant 17 : i32
    %57 = vector.broadcast %c17_i32_10 : i32 to vector<8x1024xi32>
    %58 = arith.shrui %56, %57 : vector<8x1024xi32>
    %59 = arith.xori %56, %58 : vector<8x1024xi32>
    %c-1640531527_i32_11 = arith.constant -1640531527 : i32
    %60 = vector.broadcast %c-1640531527_i32_11 : i32 to vector<8x1024xi32>
    %61 = arith.addi %59, %60 : vector<8x1024xi32>
    %c13_i32_12 = arith.constant 13 : i32
    %62 = vector.broadcast %c13_i32_12 : i32 to vector<8x1024xi32>
    %63 = arith.shli %61, %62 : vector<8x1024xi32>
    %64 = arith.xori %61, %63 : vector<8x1024xi32>
    %c7_i32_13 = arith.constant 7 : i32
    %65 = vector.broadcast %c7_i32_13 : i32 to vector<8x1024xi32>
    %66 = arith.shrui %64, %65 : vector<8x1024xi32>
    %67 = arith.xori %64, %66 : vector<8x1024xi32>
    %c-2048144789_i32_14 = arith.constant -2048144789 : i32
    %68 = vector.broadcast %c-2048144789_i32_14 : i32 to vector<8x1024xi32>
    %69 = arith.addi %67, %68 : vector<8x1024xi32>
    %c9_i32_15 = arith.constant 9 : i32
    %70 = vector.broadcast %c9_i32_15 : i32 to vector<8x1024xi32>
    %71 = arith.shli %69, %70 : vector<8x1024xi32>
    %72 = arith.xori %69, %71 : vector<8x1024xi32>
    %c16_i32_16 = arith.constant 16 : i32
    %73 = vector.broadcast %c16_i32_16 : i32 to vector<8x1024xi32>
    %74 = arith.shrui %72, %73 : vector<8x1024xi32>
    %75 = arith.xori %72, %74 : vector<8x1024xi32>
    %c-1028477387_i32_17 = arith.constant -1028477387 : i32
    %76 = vector.broadcast %c-1028477387_i32_17 : i32 to vector<8x1024xi32>
    %77 = arith.addi %75, %76 : vector<8x1024xi32>
    %c5_i32_18 = arith.constant 5 : i32
    %78 = vector.broadcast %c5_i32_18 : i32 to vector<8x1024xi32>
    %79 = arith.shli %77, %78 : vector<8x1024xi32>
    %80 = arith.xori %77, %79 : vector<8x1024xi32>
    %c11_i32_19 = arith.constant 11 : i32
    %81 = vector.broadcast %c11_i32_19 : i32 to vector<8x1024xi32>
    %82 = arith.shrui %80, %81 : vector<8x1024xi32>
    %83 = arith.xori %80, %82 : vector<8x1024xi32>
    %c255_i32 = arith.constant 255 : i32
    %84 = vector.broadcast %c255_i32 : i32 to vector<8x1024xi32>
    %85 = arith.andi %83, %84 : vector<8x1024xi32>
    %c8_i32_20 = arith.constant 8 : i32
    %86 = vector.broadcast %c8_i32_20 : i32 to vector<8x1024xi32>
    %87 = arith.shrsi %83, %86 : vector<8x1024xi32>
    %c255_i32_21 = arith.constant 255 : i32
    %88 = vector.broadcast %c255_i32_21 : i32 to vector<8x1024xi32>
    %89 = arith.andi %87, %88 : vector<8x1024xi32>
    %90 = arith.addi %85, %89 : vector<8x1024xi32>
    %c16_i32_22 = arith.constant 16 : i32
    %91 = vector.broadcast %c16_i32_22 : i32 to vector<8x1024xi32>
    %92 = arith.shrsi %83, %91 : vector<8x1024xi32>
    %c255_i32_23 = arith.constant 255 : i32
    %93 = vector.broadcast %c255_i32_23 : i32 to vector<8x1024xi32>
    %94 = arith.andi %92, %93 : vector<8x1024xi32>
    %95 = arith.addi %90, %94 : vector<8x1024xi32>
    %c24_i32 = arith.constant 24 : i32
    %96 = vector.broadcast %c24_i32 : i32 to vector<8x1024xi32>
    %97 = arith.shrsi %83, %96 : vector<8x1024xi32>
    %c255_i32_24 = arith.constant 255 : i32
    %98 = vector.broadcast %c255_i32_24 : i32 to vector<8x1024xi32>
    %99 = arith.andi %97, %98 : vector<8x1024xi32>
    %100 = arith.addi %95, %99 : vector<8x1024xi32>
    %101 = arith.sitofp %100 : vector<8x1024xi32> to vector<8x1024xf32>
    %cst_25 = arith.constant 5.100000e+02 : f32
    %102 = vector.broadcast %cst_25 : f32 to vector<8x1024xf32>
    %103 = arith.subf %101, %102 : vector<8x1024xf32>
    %104 = arith.truncf %103 : vector<8x1024xf32> to vector<8x1024xbf16>
    %c0_26 = arith.constant 0 : index
    %c0_27 = arith.constant 0 : index
    %105 = vector.load %arg3[%c0_26, %c0_27] : memref<1024x8xbf16, #tpu.memory_space<vmem>>, vector<1024x8xbf16>
    %cst_28 = arith.constant dense<0.000000e+00> : vector<8x8xf32>
    %106 = tpu.matmul %104, %105, %cst_28 {dimension_numbers = #tpu.dot_dimension_numbers<[1], [0], [0], [1], [0, 0, 1, 1], [], []>} : vector<8x1024xbf16>, vector<1024x8xbf16>, vector<8x8xf32> -> vector<8x8xf32>
    %107 = arith.addf %52, %106 : vector<8x8xf32>
    %c0_29 = arith.constant 0 : index
    %c0_30 = arith.constant 0 : index
    %108 = vector.load %arg2[%c0_29, %c0_30] : memref<8x8xf32, #tpu.memory_space<vmem>>, vector<8x8xf32>
    %cst_31 = arith.constant dense<0xFF800000> : vector<8xf32>
    %109 = vector.multi_reduction <maximumf>, %108, %cst_31 [1] : vector<8x8xf32> to vector<8xf32>
    %110 = vector.shape_cast %109 : vector<8xf32> to vector<8x1xf32>
    %111 = vector.broadcast %110 : vector<8x1xf32> to vector<8x8xf32>
    %112 = arith.subf %108, %111 : vector<8x8xf32>
    %113 = math.exp %112 : vector<8x8xf32>
    %cst_32 = arith.constant dense<0.000000e+00> : vector<8xf32>
    %114 = vector.multi_reduction <add>, %113, %cst_32 [1] : vector<8x8xf32> to vector<8xf32>
    %115 = vector.shape_cast %114 : vector<8xf32> to vector<8x1xf32>
    %116 = math.log %115 : vector<8x1xf32>
    %117 = vector.broadcast %116 : vector<8x1xf32> to vector<8x8xf32>
    %118 = arith.subf %112, %117 : vector<8x8xf32>
    %119 = math.exp %118 : vector<8x8xf32>
    %120 = arith.mulf %119, %107 : vector<8x8xf32>
    %cst_33 = arith.constant dense<0.000000e+00> : vector<8xf32>
    %121 = vector.multi_reduction <add>, %120, %cst_33 [1] : vector<8x8xf32> to vector<8xf32>
    %122 = vector.shape_cast %121 : vector<8xf32> to vector<8x1xf32>
    %123 = vector.broadcast %122 : vector<8x1xf32> to vector<8x8xf32>
    %124 = arith.subf %107, %123 : vector<8x8xf32>
    %125 = arith.mulf %119, %124 : vector<8x8xf32>
    %c0_34 = arith.constant 0 : index
    %c0_35 = arith.constant 0 : index
    %126 = vector.load %arg4[%c0_34, %c0_35] : memref<8x8xf32, #tpu.memory_space<vmem>>, vector<8x8xf32>
    %cst_36 = arith.constant dense<0.000000e+00> : vector<8x8xf32>
    %127 = tpu.matmul %125, %126, %cst_36 {dimension_numbers = #tpu.dot_dimension_numbers<[1], [0], [0], [1], [0, 0, 1, 1], [], []>} : vector<8x8xf32>, vector<8x8xf32>, vector<8x8xf32> -> vector<8x8xf32>
    %128 = arith.mulf %125, %127 : vector<8x8xf32>
    %cst_37 = arith.constant dense<0.000000e+00> : vector<8xf32>
    %129 = vector.multi_reduction <add>, %128, %cst_37 [1] : vector<8x8xf32> to vector<8xf32>
    %130 = vector.shape_cast %129 : vector<8xf32> to vector<8x1xf32>
    %cst_38 = arith.constant 1.000000e-24 : f32
    %131 = vector.broadcast %cst_38 : f32 to vector<8x1xf32>
    %132 = arith.maximumf %130, %131 : vector<8x1xf32>
    %133 = math.rsqrt %132 : vector<8x1xf32>
    %cst_39 = arith.constant 3.500000e+00 : f32
    %134 = vector.broadcast %cst_39 : f32 to vector<8x1xf32>
    %135 = arith.mulf %134, %133 : vector<8x1xf32>
    %136 = vector.broadcast %135 : vector<8x1xf32> to vector<8x8xf32>
    %137 = arith.mulf %136, %127 : vector<8x8xf32>
    %138 = arith.addf %108, %137 : vector<8x8xf32>
    %cst_40 = arith.constant dense<0xFF800000> : vector<8xf32>
    %139 = vector.multi_reduction <maximumf>, %138, %cst_40 [1] : vector<8x8xf32> to vector<8xf32>
    %140 = vector.shape_cast %139 : vector<8xf32> to vector<8x1xf32>
    %141 = vector.broadcast %140 : vector<8x1xf32> to vector<8x8xf32>
    %142 = arith.subf %138, %141 : vector<8x8xf32>
    %143 = math.exp %142 : vector<8x8xf32>
    %cst_41 = arith.constant dense<0.000000e+00> : vector<8xf32>
    %144 = vector.multi_reduction <add>, %143, %cst_41 [1] : vector<8x8xf32> to vector<8xf32>
    %145 = vector.shape_cast %144 : vector<8xf32> to vector<8x1xf32>
    %146 = math.log %145 : vector<8x1xf32>
    %147 = vector.broadcast %146 : vector<8x1xf32> to vector<8x8xf32>
    %148 = arith.subf %142, %147 : vector<8x8xf32>
    %149 = arith.subf %118, %148 : vector<8x8xf32>
    %150 = arith.mulf %119, %149 : vector<8x8xf32>
    %cst_42 = arith.constant dense<0.000000e+00> : vector<8xf32>
    %151 = vector.multi_reduction <add>, %150, %cst_42 [1] : vector<8x8xf32> to vector<8xf32>
    %152 = vector.shape_cast %151 : vector<8xf32> to vector<8x1xf32>
    %c0_43 = arith.constant 0 : index
    %c0_44 = arith.constant 0 : index
    %153 = vector.load %arg5[%c0_43, %c0_44] : memref<8x1xf32, #tpu.memory_space<vmem>>, vector<8x1xf32>
    tpu.vector_store %arg5[%c0_43, %c0_44], %152 {strides = array<i32>} : memref<8x1xf32, #tpu.memory_space<vmem>>, vector<8x1xf32>,
    return
  }
  func.func @transform_0(%arg0: i32, %arg1: memref<1xi32, #tpu.memory_space<smem>>) -> (i32, i32) {
    %c0_i32 = arith.constant 0 : i32
    %c0_i32_0 = arith.constant 0 : i32
    return %arg0, %c0_i32 : i32, i32
  }
  func.func @transform_1(%arg0: i32, %arg1: memref<1xi32, #tpu.memory_space<smem>>) -> (i32, i32) {
    %c0_i32 = arith.constant 0 : i32
    %c0_i32_0 = arith.constant 0 : i32
    %c0_i32_1 = arith.constant 0 : i32
    return %c0_i32, %c0_i32_0 : i32, i32
  }
  func.func @transform_2(%arg0: i32, %arg1: memref<1xi32, #tpu.memory_space<smem>>) -> (i32, i32) {
    %c0_i32 = arith.constant 0 : i32
    %c0_i32_0 = arith.constant 0 : i32
    %c0_i32_1 = arith.constant 0 : i32
    return %c0_i32, %c0_i32_0 : i32, i32
  }
  func.func @transform_3(%arg0: i32, %arg1: memref<1xi32, #tpu.memory_space<smem>>) -> (i32, i32) {
    %c0_i32 = arith.constant 0 : i32
    %c0_i32_0 = arith.constant 0 : i32
    return %arg0, %c0_i32 : i32, i32
  }
}

</mosaic_0001>

<llo_original>
// kernel: tpu_custom_call.1
$region0: #{tpu_custom_call.1}
  #allocation0 [shape = 'u32[]', space=smem, size = 0x4, offset = 0x4, fixed_abs, tag = 'smem constant byte address 0x4 - core index']
  #allocation1 [shape = 'u32[72,128]{1,0:T(1,128)}', space=vmem, size = 0x9000, scoped, tag = 'internal scratch']
  #allocation2 [shape = 's32[1]{0}', space=sflag, size = 0x4, scoped, tag = 'scoped memory for tpu_custom_call.1']
  #allocation3 [shape = 's32[1]{0:T(128)S(6)}', space=smem, size = 0x200, scoped, tag = 'prefetched SMEM operand 0']
  %s0 = inlined_call_operand.<no memory space> [shape: s32[1], index: 0, kind: input, shape index: {}]
  %s1 = inlined_call_operand.vmem [shape: f32[8,8], index: 1, kind: input, shape index: {}]
  %s2 = inlined_call_operand.vmem [shape: bf16[1024,8], index: 2, kind: input, shape index: {}]
  %s3 = inlined_call_operand.vmem [shape: f32[8,8], index: 3, kind: input, shape index: {}]
  %s4 = inlined_call_operand.vmem [shape: f32[8,1], index: 4, kind: output, shape index: {}]
  %s5 = sld [smem:[#allocation0]]
  $region22: #{tpu_custom_call.1} parent=0
    _
  %s7 = ssub.s32 1, %s5
  %s8 = scalar_select 0, %s7, %s5
  %9 = sst [smem:[#allocation3]] %s0
  // Predicated region
  $region2: #{tpu_custom_call.1} parent=0 // pred_check
    _
  $region3: #{tpu_custom_call.1} parent=0 // pred_check_branch
    %11 = sbr.rel (0) target = $region5
  $region4: #{tpu_custom_call.1} parent=0 // pred_region
    _
  $region5: #{tpu_custom_call.1} parent=0 // pred_fallthru
    _
  // Predicated region
  $region6: #{tpu_custom_call.1} parent=0 // pred_check
    _
  $region7: #{tpu_custom_call.1} parent=0 // pred_check_branch
    %13 = sbr.rel (0) target = $region9
  $region8: #{tpu_custom_call.1} parent=0 // pred_region
    _
  $region9: #{tpu_custom_call.1} parent=0 // pred_fallthru
    _
  // Predicated region
  $region10: #{tpu_custom_call.1} parent=0 // pred_check
    _
  $region11: #{tpu_custom_call.1} parent=0 // pred_check_branch
    %15 = sbr.rel (0) target = $region13
  $region12: #{tpu_custom_call.1} parent=0 // pred_region
    _
  $region13: #{tpu_custom_call.1} parent=0 // pred_fallthru
    _
  %s16 = sld [smem:[#allocation3]]
  %s17 = sshrl.u32 %s16, 17
  %s18 = sxor.u32 %s16, %s17
  %s19 = sadd.s32 %s18, 2654435769
  %s20 = sshll.u32 %s19, 13
  %s21 = sxor.u32 %s19, %s20
  %s22 = sshrl.u32 %s21, 7
  %s23 = sxor.u32 %s21, %s22
  %s24 = sadd.s32 %s23, 2246822507
  %s25 = sshll.u32 %s24, 9
  %s26 = sxor.u32 %s24, %s25
  %s27 = sshrl.u32 %s26, 16
  %s28 = sxor.u32 %s26, %s27
  %s29 = sadd.s32 %s28, 3266489909
  %s30 = sshll.u32 %s29, 5
  %s31 = sxor.u32 %s29, %s30
  %s32 = sshrl.u32 %s31, 11
  %s33 = sxor.u32 %s31, %s32
  %v34 = vlaneseq
  %v35 = vshrl.u32 %v34, 7
  %s36 = smul.u32 0, 8
  %v37 = vstv %s36
  %v38 = vadd.s32 %v35, %v37
  %v39 = vstv %s33
  %v40 = vadd.s32 %v39, %v38
  %v41 = vshrl.u32 %v40, 17
  %v42 = vxor.u32 %v40, %v41
  %v43 = vadd.s32 %v42, 2654435769
  %v44 = vshll.u32 %v43, 13
  %v45 = vxor.u32 %v43, %v44
  %v46 = vshrl.u32 %v45, 7
  %v47 = vxor.u32 %v45, %v46
  %v48 = vadd.s32 %v47, 2246822507
  %v49 = vshll.u32 %v48, 9
  %v50 = vxor.u32 %v48, %v49
  %v51 = vshrl.u32 %v50, 16
  %v52 = vxor.u32 %v50, %v51
  %v53 = vadd.s32 %v52, 3266489909
  %v54 = vshll.u32 %v53, 5
  %v55 = vxor.u32 %v53, %v54
  %v56 = vshrl.u32 %v55, 11
  %v57 = vxor.u32 %v55, %v56
  %v58 = vlaneseq
  %v59 = vand.u32 %v58, 127
  %v60 = vadd.s32 %v59, 128
  %v61 = vadd.s32 %v59, 256
  %v62 = vadd.s32 %v59, 384
  %v63 = vadd.s32 %v59, 512
  %v64 = vadd.s32 %v59, 640
  %v65 = vadd.s32 %v59, 768
  %v66 = vadd.s32 %v59, 896
  %v67 = vadd.s32 %v59, %v57
  %v68 = vadd.s32 %v60, %v57
  %v69 = vadd.s32 %v61, %v57
  %v70 = vadd.s32 %v62, %v57
  %v71 = vadd.s32 %v63, %v57
  %v72 = vadd.s32 %v64, %v57
  %v73 = vadd.s32 %v65, %v57
  %v74 = vadd.s32 %v66, %v57
  %v75 = vshrl.u32 %v67, 17
  %v76 = vshrl.u32 %v68, 17
  %v77 = vshrl.u32 %v69, 17
  %v78 = vshrl.u32 %v70, 17
  %v79 = vshrl.u32 %v71, 17
  %v80 = vshrl.u32 %v72, 17
  %v81 = vshrl.u32 %v73, 17
  %v82 = vshrl.u32 %v74, 17
  %v83 = vxor.u32 %v67, %v75
  %v84 = vxor.u32 %v68, %v76
  %v85 = vxor.u32 %v69, %v77
  %v86 = vxor.u32 %v70, %v78
  %v87 = vxor.u32 %v71, %v79
  %v88 = vxor.u32 %v72, %v80
  %v89 = vxor.u32 %v73, %v81
  %v90 = vxor.u32 %v74, %v82
  %v91 = vadd.s32 %v83, 2654435769
  %v92 = vadd.s32 %v84, 2654435769
  %v93 = vadd.s32 %v85, 2654435769
  %v94 = vadd.s32 %v86, 2654435769
  %v95 = vadd.s32 %v87, 2654435769
  %v96 = vadd.s32 %v88, 2654435769
  %v97 = vadd.s32 %v89, 2654435769
  %v98 = vadd.s32 %v90, 2654435769
  %v99 = vshll.u32 %v91, 13
  %v100 = vshll.u32 %v92, 13
  %v101 = vshll.u32 %v93, 13
  %v102 = vshll.u32 %v94, 13
  %v103 = vshll.u32 %v95, 13
  %v104 = vshll.u32 %v96, 13
  %v105 = vshll.u32 %v97, 13
  %v106 = vshll.u32 %v98, 13
  %v107 = vxor.u32 %v91, %v99
  %v108 = vxor.u32 %v92, %v100
  %v109 = vxor.u32 %v93, %v101
  %v110 = vxor.u32 %v94, %v102
  %v111 = vxor.u32 %v95, %v103
  %v112 = vxor.u32 %v96, %v104
  %v113 = vxor.u32 %v97, %v105
  %v114 = vxor.u32 %v98, %v106
  %v115 = vshrl.u32 %v107, 7
  %v116 = vshrl.u32 %v108, 7
  %v117 = vshrl.u32 %v109, 7
  %v118 = vshrl.u32 %v110, 7
  %v119 = vshrl.u32 %v111, 7
  %v120 = vshrl.u32 %v112, 7
  %v121 = vshrl.u32 %v113, 7
  %v122 = vshrl.u32 %v114, 7
  %v123 = vxor.u32 %v107, %v115
  %v124 = vxor.u32 %v108, %v116
  %v125 = vxor.u32 %v109, %v117
  %v126 = vxor.u32 %v110, %v118
  %v127 = vxor.u32 %v111, %v119
  %v128 = vxor.u32 %v112, %v120
  %v129 = vxor.u32 %v113, %v121
  %v130 = vxor.u32 %v114, %v122
  %v131 = vadd.s32 %v123, 2246822507
  %v132 = vadd.s32 %v124, 2246822507
  %v133 = vadd.s32 %v125, 2246822507
  %v134 = vadd.s32 %v126, 2246822507
  %v135 = vadd.s32 %v127, 2246822507
  %v136 = vadd.s32 %v128, 2246822507
  %v137 = vadd.s32 %v129, 2246822507
  %v138 = vadd.s32 %v130, 2246822507
  %v139 = vshll.u32 %v131, 9
  %v140 = vshll.u32 %v132, 9
  %v141 = vshll.u32 %v133, 9
  %v142 = vshll.u32 %v134, 9
  %v143 = vshll.u32 %v135, 9
  %v144 = vshll.u32 %v136, 9
  %v145 = vshll.u32 %v137, 9
  %v146 = vshll.u32 %v138, 9
  %v147 = vxor.u32 %v131, %v139
  %v148 = vxor.u32 %v132, %v140
  %v149 = vxor.u32 %v133, %v141
  %v150 = vxor.u32 %v134, %v142
  %v151 = vxor.u32 %v135, %v143
  %v152 = vxor.u32 %v136, %v144
  %v153 = vxor.u32 %v137, %v145
  %v154 = vxor.u32 %v138, %v146
  %v155 = vshrl.u32 %v147, 16
  %v156 = vshrl.u32 %v148, 16
  %v157 = vshrl.u32 %v149, 16
  %v158 = vshrl.u32 %v150, 16
  %v159 = vshrl.u32 %v151, 16
  %v160 = vshrl.u32 %v152, 16
  %v161 = vshrl.u32 %v153, 16
  %v162 = vshrl.u32 %v154, 16
  %v163 = vxor.u32 %v147, %v155
  %v164 = vxor.u32 %v148, %v156
  %v165 = vxor.u32 %v149, %v157
  %v166 = vxor.u32 %v150, %v158
  %v167 = vxor.u32 %v151, %v159
  %v168 = vxor.u32 %v152, %v160
  %v169 = vxor.u32 %v153, %v161
  %v170 = vxor.u32 %v154, %v162
  %v171 = vadd.s32 %v163, 3266489909
  %v172 = vadd.s32 %v164, 3266489909
  %v173 = vadd.s32 %v165, 3266489909
  %v174 = vadd.s32 %v166, 3266489909
  %v175 = vadd.s32 %v167, 3266489909
  %v176 = vadd.s32 %v168, 3266489909
  %v177 = vadd.s32 %v169, 3266489909
  %v178 = vadd.s32 %v170, 3266489909
  %v179 = vshll.u32 %v171, 5
  %v180 = vshll.u32 %v172, 5
  %v181 = vshll.u32 %v173, 5
  %v182 = vshll.u32 %v174, 5
  %v183 = vshll.u32 %v175, 5
  %v184 = vshll.u32 %v176, 5
  %v185 = vshll.u32 %v177, 5
  %v186 = vshll.u32 %v178, 5
  %v187 = vxor.u32 %v171, %v179
  %v188 = vxor.u32 %v172, %v180
  %v189 = vxor.u32 %v173, %v181
  %v190 = vxor.u32 %v174, %v182
  %v191 = vxor.u32 %v175, %v183
  %v192 = vxor.u32 %v176, %v184
  %v193 = vxor.u32 %v177, %v185
  %v194 = vxor.u32 %v178, %v186
  %v195 = vshrl.u32 %v187, 11
  %v196 = vshrl.u32 %v188, 11
  %v197 = vshrl.u32 %v189, 11
  %v198 = vshrl.u32 %v190, 11
  %v199 = vshrl.u32 %v191, 11
  %v200 = vshrl.u32 %v192, 11
  %v201 = vshrl.u32 %v193, 11
  %v202 = vshrl.u32 %v194, 11
  %v203 = vxor.u32 %v187, %v195
  %v204 = vxor.u32 %v188, %v196
  %v205 = vxor.u32 %v189, %v197
  %v206 = vxor.u32 %v190, %v198
  %v207 = vxor.u32 %v191, %v199
  %v208 = vxor.u32 %v192, %v200
  %v209 = vxor.u32 %v193, %v201
  %v210 = vxor.u32 %v194, %v202
  %v211 = vand.u32 %v203, 255
  %v212 = vand.u32 %v204, 255
  %v213 = vand.u32 %v205, 255
  %v214 = vand.u32 %v206, 255
  %v215 = vand.u32 %v207, 255
  %v216 = vand.u32 %v208, 255
  %v217 = vand.u32 %v209, 255
  %v218 = vand.u32 %v210, 255
  %v219 = vshra.s32 %v203, 8
  %v220 = vshra.s32 %v204, 8
  %v221 = vshra.s32 %v205, 8
  %v222 = vshra.s32 %v206, 8
  %v223 = vshra.s32 %v207, 8
  %v224 = vshra.s32 %v208, 8
  %v225 = vshra.s32 %v209, 8
  %v226 = vshra.s32 %v210, 8
  %v227 = vand.u32 %v219, 255
  %v228 = vand.u32 %v220, 255
  %v229 = vand.u32 %v221, 255
  %v230 = vand.u32 %v222, 255
  %v231 = vand.u32 %v223, 255
  %v232 = vand.u32 %v224, 255
  %v233 = vand.u32 %v225, 255
  %v234 = vand.u32 %v226, 255
  %v235 = vadd.s32 %v211, %v227
  %v236 = vadd.s32 %v212, %v228
  %v237 = vadd.s32 %v213, %v229
  %v238 = vadd.s32 %v214, %v230
  %v239 = vadd.s32 %v215, %v231
  %v240 = vadd.s32 %v216, %v232
  %v241 = vadd.s32 %v217, %v233
  %v242 = vadd.s32 %v218, %v234
  %v243 = vshra.s32 %v203, 16
  %v244 = vshra.s32 %v204, 16
  %v245 = vshra.s32 %v205, 16
  %v246 = vshra.s32 %v206, 16
  %v247 = vshra.s32 %v207, 16
  %v248 = vshra.s32 %v208, 16
  %v249 = vshra.s32 %v209, 16
  %v250 = vshra.s32 %v210, 16
  %v251 = vand.u32 %v243, 255
  %v252 = vand.u32 %v244, 255
  %v253 = vand.u32 %v245, 255
  %v254 = vand.u32 %v246, 255
  %v255 = vand.u32 %v247, 255
  %v256 = vand.u32 %v248, 255
  %v257 = vand.u32 %v249, 255
  %v258 = vand.u32 %v250, 255
  %v259 = vadd.s32 %v235, %v251
  %v260 = vadd.s32 %v236, %v252
  %v261 = vadd.s32 %v237, %v253
  %v262 = vadd.s32 %v238, %v254
  %v263 = vadd.s32 %v239, %v255
  %v264 = vadd.s32 %v240, %v256
  %v265 = vadd.s32 %v241, %v257
  %v266 = vadd.s32 %v242, %v258
  %v267 = vshra.s32 %v203, 24
  %v268 = vshra.s32 %v204, 24
  %v269 = vshra.s32 %v205, 24
  %v270 = vshra.s32 %v206, 24
  %v271 = vshra.s32 %v207, 24
  %v272 = vshra.s32 %v208, 24
  %v273 = vshra.s32 %v209, 24
  %v274 = vshra.s32 %v210, 24
  %v275 = vand.u32 %v267, 255
  %v276 = vand.u32 %v268, 255
  %v277 = vand.u32 %v269, 255
  %v278 = vand.u32 %v270, 255
  %v279 = vand.u32 %v271, 255
  %v280 = vand.u32 %v272, 255
  %v281 = vand.u32 %v273, 255
  %v282 = vand.u32 %v274, 255
  %v283 = vadd.s32 %v259, %v275
  %v284 = vadd.s32 %v260, %v276
  %v285 = vadd.s32 %v261, %v277
  %v286 = vadd.s32 %v262, %v278
  %v287 = vadd.s32 %v263, %v279
  %v288 = vadd.s32 %v264, %v280
  %v289 = vadd.s32 %v265, %v281
  %v290 = vadd.s32 %v266, %v282
  %v291 = vcvt.s32.f32 %v283
  %v292 = vcvt.s32.f32 %v284
  %v293 = vcvt.s32.f32 %v285
  %v294 = vcvt.s32.f32 %v286
  %v295 = vcvt.s32.f32 %v287
  %v296 = vcvt.s32.f32 %v288
  %v297 = vcvt.s32.f32 %v289
  %v298 = vcvt.s32.f32 %v290
  %v299 = vsub.f32 %v291, 510.0
  %v300 = vsub.f32 %v292, 510.0
  %v301 = vsub.f32 %v293, 510.0
  %v302 = vsub.f32 %v294, 510.0
  %v303 = vsub.f32 %v295, 510.0
  %v304 = vsub.f32 %v296, 510.0
  %v305 = vsub.f32 %v297, 510.0
  %v306 = vsub.f32 %v298, 510.0
  %v307 = vpack.c.bf16 %v299, %v299
  %v308 = vpack.c.bf16 %v300, %v300
  %v309 = vpack.c.bf16 %v301, %v301
  %v310 = vpack.c.bf16 %v302, %v302
  %v311 = vpack.c.bf16 %v303, %v303
  %v312 = vpack.c.bf16 %v304, %v304
  %v313 = vpack.c.bf16 %v305, %v305
  %v314 = vpack.c.bf16 %v306, %v306
  %v315 = vld [vmem:[%s2] sm:$0xf]
  %v316 = vld [vmem:[%s2 + $0x4] sm:$0xf]
  %v317 = vld [vmem:[%s2 + $0x8] sm:$0xf]
  %v318 = vld [vmem:[%s2 + $0xc] sm:$0xf]
  %v319 = vld [vmem:[%s2 + $0x10] sm:$0xf]
  %v320 = vld [vmem:[%s2 + $0x14] sm:$0xf]
  %v321 = vld [vmem:[%s2 + $0x18] sm:$0xf]
  %v322 = vld [vmem:[%s2 + $0x1c] sm:$0xf]
  %v323 = vld [vmem:[%s2 + $0x20] sm:$0xf]
  %v324 = vld [vmem:[%s2 + $0x24] sm:$0xf]
  %v325 = vld [vmem:[%s2 + $0x28] sm:$0xf]
  %v326 = vld [vmem:[%s2 + $0x2c] sm:$0xf]
  %v327 = vld [vmem:[%s2 + $0x30] sm:$0xf]
  %v328 = vld [vmem:[%s2 + $0x34] sm:$0xf]
  %v329 = vld [vmem:[%s2 + $0x38] sm:$0xf]
  %v330 = vld [vmem:[%s2 + $0x3c] sm:$0xf]
  %v331 = vld [vmem:[%s2 + $0x40] sm:$0xf]
  %v332 = vld [vmem:[%s2 + $0x44] sm:$0xf]
  %v333 = vld [vmem:[%s2 + $0x48] sm:$0xf]
  %v334 = vld [vmem:[%s2 + $0x4c] sm:$0xf]
  %v335 = vld [vmem:[%s2 + $0x50] sm:$0xf]
  %v336 = vld [vmem:[%s2 + $0x54] sm:$0xf]
  %v337 = vld [vmem:[%s2 + $0x58] sm:$0xf]
  %v338 = vld [vmem:[%s2 + $0x5c] sm:$0xf]
  %v339 = vld [vmem:[%s2 + $0x60] sm:$0xf]
  %v340 = vld [vmem:[%s2 + $0x64] sm:$0xf]
  %v341 = vld [vmem:[%s2 + $0x68] sm:$0xf]
  %v342 = vld [vmem:[%s2 + $0x6c] sm:$0xf]
  %v343 = vld [vmem:[%s2 + $0x70] sm:$0xf]
  %v344 = vld [vmem:[%s2 + $0x74] sm:$0xf]
  %v345 = vld [vmem:[%s2 + $0x78] sm:$0xf]
  %v346 = vld [vmem:[%s2 + $0x7c] sm:$0xf]
  %v347 = vld [vmem:[%s2 + $0x80] sm:$0xf]
  %v348 = vld [vmem:[%s2 + $0x84] sm:$0xf]
  %v349 = vld [vmem:[%s2 + $0x88] sm:$0xf]
  %v350 = vld [vmem:[%s2 + $0x8c] sm:$0xf]
  %v351 = vld [vmem:[%s2 + $0x90] sm:$0xf]
  %v352 = vld [vmem:[%s2 + $0x94] sm:$0xf]
  %v353 = vld [vmem:[%s2 + $0x98] sm:$0xf]
  %v354 = vld [vmem:[%s2 + $0x9c] sm:$0xf]
  %v355 = vld [vmem:[%s2 + $0xa0] sm:$0xf]
  %v356 = vld [vmem:[%s2 + $0xa4] sm:$0xf]
  %v357 = vld [vmem:[%s2 + $0xa8] sm:$0xf]
  %v358 = vld [vmem:[%s2 + $0xac] sm:$0xf]
  %v359 = vld [vmem:[%s2 + $0xb0] sm:$0xf]
  %v360 = vld [vmem:[%s2 + $0xb4] sm:$0xf]
  %v361 = vld [vmem:[%s2 + $0xb8] sm:$0xf]
  %v362 = vld [vmem:[%s2 + $0xbc] sm:$0xf]
  %v363 = vld [vmem:[%s2 + $0xc0] sm:$0xf]
  %v364 = vld [vmem:[%s2 + $0xc4] sm:$0xf]
  %v365 = vld [vmem:[%s2 + $0xc8] sm:$0xf]
  %v366 = vld [vmem:[%s2 + $0xcc] sm:$0xf]
  %v367 = vld [vmem:[%s2 + $0xd0] sm:$0xf]
  %v368 = vld [vmem:[%s2 + $0xd4] sm:$0xf]
  %v369 = vld [vmem:[%s2 + $0xd8] sm:$0xf]
  %v370 = vld [vmem:[%s2 + $0xdc] sm:$0xf]
  %v371 = vld [vmem:[%s2 + $0xe0] sm:$0xf]
  %v372 = vld [vmem:[%s2 + $0xe4] sm:$0xf]
  %v373 = vld [vmem:[%s2 + $0xe8] sm:$0xf]
  %v374 = vld [vmem:[%s2 + $0xec] sm:$0xf]
  %v375 = vld [vmem:[%s2 + $0xf0] sm:$0xf]
  %v376 = vld [vmem:[%s2 + $0xf4] sm:$0xf]
  %v377 = vld [vmem:[%s2 + $0xf8] sm:$0xf]
  %v378 = vld [vmem:[%s2 + $0xfc] sm:$0xf]
  %v379 = vld [vmem:[%s2 + $0x100] sm:$0xf]
  %v380 = vld [vmem:[%s2 + $0x104] sm:$0xf]
  %v381 = vld [vmem:[%s2 + $0x108] sm:$0xf]
  %v382 = vld [vmem:[%s2 + $0x10c] sm:$0xf]
  %v383 = vld [vmem:[%s2 + $0x110] sm:$0xf]
  %v384 = vld [vmem:[%s2 + $0x114] sm:$0xf]
  %v385 = vld [vmem:[%s2 + $0x118] sm:$0xf]
  %v386 = vld [vmem:[%s2 + $0x11c] sm:$0xf]
  %v387 = vld [vmem:[%s2 + $0x120] sm:$0xf]
  %v388 = vld [vmem:[%s2 + $0x124] sm:$0xf]
  %v389 = vld [vmem:[%s2 + $0x128] sm:$0xf]
  %v390 = vld [vmem:[%s2 + $0x12c] sm:$0xf]
  %v391 = vld [vmem:[%s2 + $0x130] sm:$0xf]
  %v392 = vld [vmem:[%s2 + $0x134] sm:$0xf]
  %v393 = vld [vmem:[%s2 + $0x138] sm:$0xf]
  %v394 = vld [vmem:[%s2 + $0x13c] sm:$0xf]
  %v395 = vld [vmem:[%s2 + $0x140] sm:$0xf]
  %v396 = vld [vmem:[%s2 + $0x144] sm:$0xf]
  %v397 = vld [vmem:[%s2 + $0x148] sm:$0xf]
  %v398 = vld [vmem:[%s2 + $0x14c] sm:$0xf]
  %v399 = vld [vmem:[%s2 + $0x150] sm:$0xf]
  %v400 = vld [vmem:[%s2 + $0x154] sm:$0xf]
  %v401 = vld [vmem:[%s2 + $0x158] sm:$0xf]
  %v402 = vld [vmem:[%s2 + $0x15c] sm:$0xf]
  %v403 = vld [vmem:[%s2 + $0x160] sm:$0xf]
  %v404 = vld [vmem:[%s2 + $0x164] sm:$0xf]
  %v405 = vld [vmem:[%s2 + $0x168] sm:$0xf]
  %v406 = vld [vmem:[%s2 + $0x16c] sm:$0xf]
  %v407 = vld [vmem:[%s2 + $0x170] sm:$0xf]
  %v408 = vld [vmem:[%s2 + $0x174] sm:$0xf]
  %v409 = vld [vmem:[%s2 + $0x178] sm:$0xf]
  %v410 = vld [vmem:[%s2 + $0x17c] sm:$0xf]
  %v411 = vld [vmem:[%s2 + $0x180] sm:$0xf]
  %v412 = vld [vmem:[%s2 + $0x184] sm:$0xf]
  %v413 = vld [vmem:[%s2 + $0x188] sm:$0xf]
  %v414 = vld [vmem:[%s2 + $0x18c] sm:$0xf]
  %v415 = vld [vmem:[%s2 + $0x190] sm:$0xf]
  %v416 = vld [vmem:[%s2 + $0x194] sm:$0xf]
  %v417 = vld [vmem:[%s2 + $0x198] sm:$0xf]
  %v418 = vld [vmem:[%s2 + $0x19c] sm:$0xf]
  %v419 = vld [vmem:[%s2 + $0x1a0] sm:$0xf]
  %v420 = vld [vmem:[%s2 + $0x1a4] sm:$0xf]
  %v421 = vld [vmem:[%s2 + $0x1a8] sm:$0xf]
  %v422 = vld [vmem:[%s2 + $0x1ac] sm:$0xf]
  %v423 = vld [vmem:[%s2 + $0x1b0] sm:$0xf]
  %v424 = vld [vmem:[%s2 + $0x1b4] sm:$0xf]
  %v425 = vld [vmem:[%s2 + $0x1b8] sm:$0xf]
  %v426 = vld [vmem:[%s2 + $0x1bc] sm:$0xf]
  %v427 = vld [vmem:[%s2 + $0x1c0] sm:$0xf]
  %v428 = vld [vmem:[%s2 + $0x1c4] sm:$0xf]
  %v429 = vld [vmem:[%s2 + $0x1c8] sm:$0xf]
  %v430 = vld [vmem:[%s2 + $0x1cc] sm:$0xf]
  %v431 = vld [vmem:[%s2 + $0x1d0] sm:$0xf]
  %v432 = vld [vmem:[%s2 + $0x1d4] sm:$0xf]
  %v433 = vld [vmem:[%s2 + $0x1d8] sm:$0xf]
  %v434 = vld [vmem:[%s2 + $0x1dc] sm:$0xf]
  %v435 = vld [vmem:[%s2 + $0x1e0] sm:$0xf]
  %v436 = vld [vmem:[%s2 + $0x1e4] sm:$0xf]
  %v437 = vld [vmem:[%s2 + $0x1e8] sm:$0xf]
  %v438 = vld [vmem:[%s2 + $0x1ec] sm:$0xf]
  %v439 = vld [vmem:[%s2 + $0x1f0] sm:$0xf]
  %v440 = vld [vmem:[%s2 + $0x1f4] sm:$0xf]
  %v441 = vld [vmem:[%s2 + $0x1f8] sm:$0xf]
  %v442 = vld [vmem:[%s2 + $0x1fc] sm:$0xf]
  %v571 = vunpack.c.l.b16 %v315
  %v572 = vunpack.c.l.b16 %v316
  %v573 = vunpack.c.l.b16 %v317
  %v574 = vunpack.c.l.b16 %v318
  %v575 = vunpack.c.l.b16 %v319
  %v576 = vunpack.c.l.b16 %v320
  %v577 = vunpack.c.l.b16 %v321
  %v578 = vunpack.c.l.b16 %v322
  %v579 = vunpack.c.l.b16 %v323
  %v580 = vunpack.c.l.b16 %v324
  %v581 = vunpack.c.l.b16 %v325
  %v582 = vunpack.c.l.b16 %v326
  %v583 = vunpack.c.l.b16 %v327
  %v584 = vunpack.c.l.b16 %v328
  %v585 = vunpack.c.l.b16 %v329
  %v586 = vunpack.c.l.b16 %v330
  %v587 = vunpack.c.l.b16 %v331
  %v588 = vunpack.c.l.b16 %v332
  %v589 = vunpack.c.l.b16 %v333
  %v590 = vunpack.c.l.b16 %v334
  %v591 = vunpack.c.l.b16 %v335
  %v592 = vunpack.c.l.b16 %v336
  %v593 = vunpack.c.l.b16 %v337
  %v594 = vunpack.c.l.b16 %v338
  %v595 = vunpack.c.l.b16 %v339
  %v596 = vunpack.c.l.b16 %v340
  %v597 = vunpack.c.l.b16 %v341
  %v598 = vunpack.c.l.b16 %v342
  %v599 = vunpack.c.l.b16 %v343
  %v600 = vunpack.c.l.b16 %v344
  %v601 = vunpack.c.l.b16 %v345
  %v602 = vunpack.c.l.b16 %v346
  %v603 = vunpack.c.l.b16 %v347
  %v604 = vunpack.c.l.b16 %v348
  %v605 = vunpack.c.l.b16 %v349
  %v606 = vunpack.c.l.b16 %v350
  %v607 = vunpack.c.l.b16 %v351
  %v608 = vunpack.c.l.b16 %v352
  %v609 = vunpack.c.l.b16 %v353
  %v610 = vunpack.c.l.b16 %v354
  %v611 = vunpack.c.l.b16 %v355
  %v612 = vunpack.c.l.b16 %v356
  %v613 = vunpack.c.l.b16 %v357
  %v614 = vunpack.c.l.b16 %v358
  %v615 = vunpack.c.l.b16 %v359
  %v616 = vunpack.c.l.b16 %v360
  %v617 = vunpack.c.l.b16 %v361
  %v618 = vunpack.c.l.b16 %v362
  %v619 = vunpack.c.l.b16 %v363
  %v620 = vunpack.c.l.b16 %v364
  %v621 = vunpack.c.l.b16 %v365
  %v622 = vunpack.c.l.b16 %v366
  %v623 = vunpack.c.l.b16 %v367
  %v624 = vunpack.c.l.b16 %v368
  %v625 = vunpack.c.l.b16 %v369
  %v626 = vunpack.c.l.b16 %v370
  %v627 = vunpack.c.l.b16 %v371
  %v628 = vunpack.c.l.b16 %v372
  %v629 = vunpack.c.l.b16 %v373
  %v630 = vunpack.c.l.b16 %v374
  %v631 = vunpack.c.l.b16 %v375
  %v632 = vunpack.c.l.b16 %v376
  %v633 = vunpack.c.l.b16 %v377
  %v634 = vunpack.c.l.b16 %v378
  %v635 = vunpack.c.l.b16 %v379
  %v636 = vunpack.c.l.b16 %v380
  %v637 = vunpack.c.l.b16 %v381
  %v638 = vunpack.c.l.b16 %v382
  %v639 = vunpack.c.l.b16 %v383
  %v640 = vunpack.c.l.b16 %v384
  %v641 = vunpack.c.l.b16 %v385
  %v642 = vunpack.c.l.b16 %v386
  %v643 = vunpack.c.l.b16 %v387
  %v644 = vunpack.c.l.b16 %v388
  %v645 = vunpack.c.l.b16 %v389
  %v646 = vunpack.c.l.b16 %v390
  %v647 = vunpack.c.l.b16 %v391
  %v648 = vunpack.c.l.b16 %v392
  %v649 = vunpack.c.l.b16 %v393
  %v650 = vunpack.c.l.b16 %v394
  %v651 = vunpack.c.l.b16 %v395
  %v652 = vunpack.c.l.b16 %v396
  %v653 = vunpack.c.l.b16 %v397
  %v654 = vunpack.c.l.b16 %v398
  %v655 = vunpack.c.l.b16 %v399
  %v656 = vunpack.c.l.b16 %v400
  %v657 = vunpack.c.l.b16 %v401
  %v658 = vunpack.c.l.b16 %v402
  %v659 = vunpack.c.l.b16 %v403
  %v660 = vunpack.c.l.b16 %v404
  %v661 = vunpack.c.l.b16 %v405
  %v662 = vunpack.c.l.b16 %v406
  %v663 = vunpack.c.l.b16 %v407
  %v664 = vunpack.c.l.b16 %v408
  %v665 = vunpack.c.l.b16 %v409
  %v666 = vunpack.c.l.b16 %v410
  %v667 = vunpack.c.l.b16 %v411
  %v668 = vunpack.c.l.b16 %v412
  %v669 = vunpack.c.l.b16 %v413
  %v670 = vunpack.c.l.b16 %v414
  %v671 = vunpack.c.l.b16 %v415
  %v672 = vunpack.c.l.b16 %v416
  %v673 = vunpack.c.l.b16 %v417
  %v674 = vunpack.c.l.b16 %v418
  %v675 = vunpack.c.l.b16 %v419
  %v676 = vunpack.c.l.b16 %v420
  %v677 = vunpack.c.l.b16 %v421
  %v678 = vunpack.c.l.b16 %v422
  %v679 = vunpack.c.l.b16 %v423
  %v680 = vunpack.c.l.b16 %v424
  %v681 = vunpack.c.l.b16 %v425
  %v682 = vunpack.c.l.b16 %v426
  %v683 = vunpack.c.l.b16 %v427
  %v684 = vunpack.c.l.b16 %v428
  %v685 = vunpack.c.l.b16 %v429
  %v686 = vunpack.c.l.b16 %v430
  %v687 = vunpack.c.l.b16 %v431
  %v688 = vunpack.c.l.b16 %v432
  %v689 = vunpack.c.l.b16 %v433
  %v690 = vunpack.c.l.b16 %v434
  %v691 = vunpack.c.l.b16 %v435
  %v692 = vunpack.c.l.b16 %v436
  %v693 = vunpack.c.l.b16 %v437
  %v694 = vunpack.c.l.b16 %v438
  %v695 = vunpack.c.l.b16 %v439
  %v696 = vunpack.c.l.b16 %v440
  %v697 = vunpack.c.l.b16 %v441
  %v698 = vunpack.c.l.b16 %v442
  %v699 = vpack.c.b16 %v572, %v571
  %v700 = vpack.c.b16 %v574, %v573
  %v701 = vpack.c.b16 %v576, %v575
  %v702 = vpack.c.b16 %v578, %v577
  %v703 = vpack.c.b16 %v580, %v579
  %v704 = vpack.c.b16 %v582, %v581
  %v705 = vpack.c.b16 %v584, %v583
  %v706 = vpack.c.b16 %v586, %v585
  %v707 = vpack.c.b16 %v588, %v587
  %v708 = vpack.c.b16 %v590, %v589
  %v709 = vpack.c.b16 %v592, %v591
  %v710 = vpack.c.b16 %v594, %v593
  %v711 = vpack.c.b16 %v596, %v595
  %v712 = vpack.c.b16 %v598, %v597
  %v713 = vpack.c.b16 %v600, %v599
  %v714 = vpack.c.b16 %v602, %v601
  %v715 = vpack.c.b16 %v604, %v603
  %v716 = vpack.c.b16 %v606, %v605
  %v717 = vpack.c.b16 %v608, %v607
  %v718 = vpack.c.b16 %v610, %v609
  %v719 = vpack.c.b16 %v612, %v611
  %v720 = vpack.c.b16 %v614, %v613
  %v721 = vpack.c.b16 %v616, %v615
  %v722 = vpack.c.b16 %v618, %v617
  %v723 = vpack.c.b16 %v620, %v619
  %v724 = vpack.c.b16 %v622, %v621
  %v725 = vpack.c.b16 %v624, %v623
  %v726 = vpack.c.b16 %v626, %v625
  %v727 = vpack.c.b16 %v628, %v627
  %v728 = vpack.c.b16 %v630, %v629
  %v729 = vpack.c.b16 %v632, %v631
  %v730 = vpack.c.b16 %v634, %v633
  %v731 = vpack.c.b16 %v636, %v635
  %v732 = vpack.c.b16 %v638, %v637
  %v733 = vpack.c.b16 %v640, %v639
  %v734 = vpack.c.b16 %v642, %v641
  %v735 = vpack.c.b16 %v644, %v643
  %v736 = vpack.c.b16 %v646, %v645
  %v737 = vpack.c.b16 %v648, %v647
  %v738 = vpack.c.b16 %v650, %v649
  %v739 = vpack.c.b16 %v652, %v651
  %v740 = vpack.c.b16 %v654, %v653
  %v741 = vpack.c.b16 %v656, %v655
  %v742 = vpack.c.b16 %v658, %v657
  %v743 = vpack.c.b16 %v660, %v659
  %v744 = vpack.c.b16 %v662, %v661
  %v745 = vpack.c.b16 %v664, %v663
  %v746 = vpack.c.b16 %v666, %v665
  %v747 = vpack.c.b16 %v668, %v667
  %v748 = vpack.c.b16 %v670, %v669
  %v749 = vpack.c.b16 %v672, %v671
  %v750 = vpack.c.b16 %v674, %v673
  %v751 = vpack.c.b16 %v676, %v675
  %v752 = vpack.c.b16 %v678, %v677
  %v753 = vpack.c.b16 %v680, %v679
  %v754 = vpack.c.b16 %v682, %v681
  %v755 = vpack.c.b16 %v684, %v683
  %v756 = vpack.c.b16 %v686, %v685
  %v757 = vpack.c.b16 %v688, %v687
  %v758 = vpack.c.b16 %v690, %v689
  %v759 = vpack.c.b16 %v692, %v691
  %v760 = vpack.c.b16 %v694, %v693
  %v761 = vpack.c.b16 %v696, %v695
  %v762 = vpack.c.b16 %v698, %v697
  %827 = vmatpush.bf16.msra.mxu0 %v706
  %828 = vmatpush.bf16.msra.mxu0 %v705
  %829 = vmatpush.bf16.msra.mxu0 %v704
  %830 = vmatpush.bf16.msra.mxu0 %v703
  %831 = vmatpush.bf16.msra.mxu0 %v702
  %832 = vmatpush.bf16.msra.mxu0 %v701
  %833 = vmatpush.bf16.msra.mxu0 %v700
  %834 = vmatpush.bf16.msra.mxu0 %v699
  %835 = vmatmul.bf16.gmra.mxu0 %v307
  %v836 = vpop.f32.mrf.mxu0
  %v837 = vadd.f32 0.0, %v836
  %v838 = vpop.f32.mrf.mxu0
  %839 = vdwg.mxu0
  %840 = vmatpush.bf16.msra.mxu0 %v714
  %841 = vmatpush.bf16.msra.mxu0 %v713
  %842 = vmatpush.bf16.msra.mxu0 %v712
  %843 = vmatpush.bf16.msra.mxu0 %v711
  %844 = vmatpush.bf16.msra.mxu0 %v710
  %845 = vmatpush.bf16.msra.mxu0 %v709
  %846 = vmatpush.bf16.msra.mxu0 %v708
  %847 = vmatpush.bf16.msra.mxu0 %v707
  %848 = vmatmul.bf16.gmra.mxu0 %v308
  %v849 = vpop.f32.mrf.mxu0
  %v850 = vadd.f32 %v837, %v849
  %v851 = vpop.f32.mrf.mxu0
  %852 = vdwg.mxu0
  %853 = vmatpush.bf16.msra.mxu0 %v722
  %854 = vmatpush.bf16.msra.mxu0 %v721
  %855 = vmatpush.bf16.msra.mxu0 %v720
  %856 = vmatpush.bf16.msra.mxu0 %v719
  %857 = vmatpush.bf16.msra.mxu0 %v718
  %858 = vmatpush.bf16.msra.mxu0 %v717
  %859 = vmatpush.bf16.msra.mxu0 %v716
  %860 = vmatpush.bf16.msra.mxu0 %v715
  %861 = vmatmul.bf16.gmra.mxu0 %v309
  %v862 = vpop.f32.mrf.mxu0
  %v863 = vadd.f32 %v850, %v862
  %v864 = vpop.f32.mrf.mxu0
  %865 = vdwg.mxu0
  %866 = vmatpush.bf16.msra.mxu0 %v730
  %867 = vmatpush.bf16.msra.mxu0 %v729
  %868 = vmatpush.bf16.msra.mxu0 %v728
  %869 = vmatpush.bf16.msra.mxu0 %v727
  %870 = vmatpush.bf16.msra.mxu0 %v726
  %871 = vmatpush.bf16.msra.mxu0 %v725
  %872 = vmatpush.bf16.msra.mxu0 %v724
  %873 = vmatpush.bf16.msra.mxu0 %v723
  %874 = vmatmul.bf16.gmra.mxu0 %v310
  %v875 = vpop.f32.mrf.mxu0
  %v876 = vadd.f32 %v863, %v875
  %v877 = vpop.f32.mrf.mxu0
  %878 = vdwg.mxu0
  %879 = vmatpush.bf16.msra.mxu0 %v738
  %880 = vmatpush.bf16.msra.mxu0 %v737
  %881 = vmatpush.bf16.msra.mxu0 %v736
  %882 = vmatpush.bf16.msra.mxu0 %v735
  %883 = vmatpush.bf16.msra.mxu0 %v734
  %884 = vmatpush.bf16.msra.mxu0 %v733
  %885 = vmatpush.bf16.msra.mxu0 %v732
  %886 = vmatpush.bf16.msra.mxu0 %v731
  %887 = vmatmul.bf16.gmra.mxu0 %v311
  %v888 = vpop.f32.mrf.mxu0
  %v889 = vadd.f32 %v876, %v888
  %v890 = vpop.f32.mrf.mxu0
  %891 = vdwg.mxu0
  %892 = vmatpush.bf16.msra.mxu0 %v746
  %893 = vmatpush.bf16.msra.mxu0 %v745
  %894 = vmatpush.bf16.msra.mxu0 %v744
  %895 = vmatpush.bf16.msra.mxu0 %v743
  %896 = vmatpush.bf16.msra.mxu0 %v742
  %897 = vmatpush.bf16.msra.mxu0 %v741
  %898 = vmatpush.bf16.msra.mxu0 %v740
  %899 = vmatpush.bf16.msra.mxu0 %v739
  %900 = vmatmul.bf16.gmra.mxu0 %v312
  %v901 = vpop.f32.mrf.mxu0
  %v902 = vadd.f32 %v889, %v901
  %v903 = vpop.f32.mrf.mxu0
  %904 = vdwg.mxu0
  %905 = vmatpush.bf16.msra.mxu0 %v754
  %906 = vmatpush.bf16.msra.mxu0 %v753
  %907 = vmatpush.bf16.msra.mxu0 %v752
  %908 = vmatpush.bf16.msra.mxu0 %v751
  %909 = vmatpush.bf16.msra.mxu0 %v750
  %910 = vmatpush.bf16.msra.mxu0 %v749
  %911 = vmatpush.bf16.msra.mxu0 %v748
  %912 = vmatpush.bf16.msra.mxu0 %v747
  %913 = vmatmul.bf16.gmra.mxu0 %v313
  %v914 = vpop.f32.mrf.mxu0
  %v915 = vadd.f32 %v902, %v914
  %v916 = vpop.f32.mrf.mxu0
  %917 = vdwg.mxu0
  %918 = vmatpush.bf16.msra.mxu0 %v762
  %919 = vmatpush.bf16.msra.mxu0 %v761
  %920 = vmatpush.bf16.msra.mxu0 %v760
  %921 = vmatpush.bf16.msra.mxu0 %v759
  %922 = vmatpush.bf16.msra.mxu0 %v758
  %923 = vmatpush.bf16.msra.mxu0 %v757
  %924 = vmatpush.bf16.msra.mxu0 %v756
  %925 = vmatpush.bf16.msra.mxu0 %v755
  %926 = vmatmul.bf16.gmra.mxu0 %v314
  %v927 = vpop.f32.mrf.mxu0
  %v928 = vadd.f32 %v915, %v927
  %v929 = vpop.f32.mrf.mxu0
  %930 = vdwg.mxu0
  %v931 = vld [vmem:[%s1] sm:$0xff]
  %vm932 = vcmask 64512
  %v933 = vsel %vm932, %v931, -inf
  %934 = vmax.xlane.f32.xlu0 %v933
  %v935 = vpop.xlane.xlu0 %934
  %v936 = vsub.f32 %v931, %v935
  %v937 = vmul.f32 %v936, 1.442695
  %v938 = vpow.pop %v937
  %v939 = vsel %vm932, %v938, 0.0
  %940 = vadd.xlane.f32.xlu0 %v939
  %v941 = vpop.xlane.xlu0 %940
  %v942 = vlog2.pop %v941
  %v943 = vmul.f32 %v942, 0.6931472
  %v944 = vsub.f32 %v936, %v943
  %v945 = vmul.f32 %v944, 1.442695
  %v946 = vpow.pop %v945
  %v947 = vmul.f32 %v946, %v928
  %v948 = vsel %vm932, %v947, 0.0
  %949 = vadd.xlane.f32.xlu0 %v948
  %v950 = vpop.xlane.xlu0 %949
  %v951 = vsub.f32 %v928, %v950
  %v952 = vmul.f32 %v946, %v951
  %v953 = vld [vmem:[%s3] sm:$0xff]
  %v955 = vsel %vm932, %v952, 0
  %957 = vmatpush.msra.mxu0 0.0
  %958 = vmatpush.msra.mxu0 0.0
  %959 = vmatpush.msra.mxu0 0.0
  %960 = vmatpush.msra.mxu0 0.0
  %961 = vmatpush.msra.mxu0 0.0
  %962 = vmatpush.msra.mxu0 0.0
  %963 = vmatpush.msra.mxu0 0.0
  %964 = vmatpush.msra.mxu0 0.0
  %965 = vmatpush.msra.mxu0 0.0
  %966 = vmatpush.msra.mxu0 0.0
  %967 = vmatpush.msra.mxu0 0.0
  %968 = vmatpush.msra.mxu0 0.0
  %969 = vmatpush.msra.mxu0 0.0
  %970 = vmatpush.msra.mxu0 0.0
  %971 = vmatpush.msra.mxu0 0.0
  %972 = vmatpush.msra.mxu0 %v953
  %973 = vmatmul.f32.gmra.mxu0 %v955
  %v974 = vpop.f32.mrf.mxu0
  %v975 = vadd.f32 0.0, %v974
  %976 = vdwg.mxu0
  %v977 = vmul.f32 %v952, %v975
  %v978 = vsel %vm932, %v977, 0.0
  %979 = vadd.xlane.f32.xlu0 %v978
  %v980 = vpop.xlane.xlu0 %979
  %v981 = vmax.f32 %v980, 1e-24
  %v982 = vrsqrt.pop %v981
  %v983 = vmul.f32 %v982, %v981
  %v984 = vmul.f32 %v983, %v982
  %v985 = vmul.f32 0.5, %v984
  %v986 = vsub.f32 1.5, %v985
  %v987 = vmul.f32 %v982, %v986
  %vm988 = vweird.f32 %v981
  %vm989 = vweird.f32 %v982
  %vm990 = vmor %vm988, %vm989
  %v991 = vsel %vm990, %v982, %v987
  %v992 = vmul.f32 %v991, 3.5
  %v993 = vmul.f32 %v992, %v975
  %v994 = vadd.f32 %v931, %v993
  %v995 = vsel %vm932, %v994, -inf
  %996 = vmax.xlane.f32.xlu0 %v995
  %v997 = vpop.xlane.xlu0 %996
  %v998 = vsub.f32 %v994, %v997
  %v999 = vmul.f32 %v998, 1.442695
  %v1000 = vpow.pop %v999
  %v1001 = vsel %vm932, %v1000, 0.0
  %1002 = vadd.xlane.f32.xlu0 %v1001
  %v1003 = vpop.xlane.xlu0 %1002
  %v1004 = vlog2.pop %v1003
  %v1005 = vmul.f32 %v1004, 0.6931472
  %v1006 = vsub.f32 %v998, %v1005
  %v1007 = vsub.f32 %v944, %v1006
  %v1008 = vmul.f32 %v946, %v1007
  %v1009 = vsel %vm932, %v1008, 0.0
  %1010 = vadd.xlane.f32.xlu0 %v1009
  %v1011 = vpop.xlane.xlu0 %1010
  %vm1012 = vcmask 7168
  %1013 = vst.msk [vmem:[%s4] sm:$0xff] %vm1012, %v1011
  // Predicated region
  $region14: #{tpu_custom_call.1} parent=0 // pred_check
    _
  $region15: #{tpu_custom_call.1} parent=0 // pred_check_branch
    %1015 = sbr.rel (0) target = $region17
  $region16: #{tpu_custom_call.1} parent=0 // pred_region
    _
  $region17: #{tpu_custom_call.1} parent=0 // pred_fallthru
    _
  // Predicated region
  $region18: #{tpu_custom_call.1} parent=0 // pred_check
    _
  $region19: #{tpu_custom_call.1} parent=0 // pred_check_branch
    %1017 = sbr.rel (0) target = $region21
  $region20: #{tpu_custom_call.1} parent=0 // pred_region
    _
  $region21: #{tpu_custom_call.1} parent=0 // pred_fallthru
    _

</llo_original>
